<compile_context>
chip_gen: v7x
topology: tpu7x:2x2x1
jax: 0.10.0
libtpu: 0.0.40
codegen_flags: <defaults>
</compile_context>

<pallas_src>
import functools

import jax
import jax.numpy as jnp
from jax import lax
from jax.experimental import pallas as pl
from jax.experimental.pallas import tpu as pltpu

IGNORE = -1.0e8  # matches the module's registered IGNORE buffer


def _attention_kernel(x_ref, wqkv_ref, bqkv_ref, wo_ref, bo_ref, o_ref, *,
                      n_heads, d_head):
    S = x_ref.shape[1]
    HD = n_heads * d_head

    x = x_ref[0]                                                     # (S, D)

    # Fused QKV projection for ALL heads in one MXU push: (S,D)@(D,3*H*Dh).
    qkv = jnp.dot(x, wqkv_ref[...],
                  preferred_element_type=jnp.float32) + bqkv_ref[...]  # (S, 3*HD)

    scale = 1.0 / (float(d_head) ** 0.5)
    q_all = qkv[:, 0 * HD:1 * HD] * scale   # fold 1/sqrt(d_head) into q
    k_all = qkv[:, 1 * HD:2 * HD]
    v_all = qkv[:, 2 * HD:3 * HD]

    # Causal mask built once per kernel invocation (reused by every head).
    row = lax.broadcasted_iota(jnp.int32, (S, S), 0)
    col = lax.broadcasted_iota(jnp.int32, (S, S), 1)
    causal = col > row

    # Per-head attention (static unroll over the small head count).
    z_heads = []
    for h in range(n_heads):
        sl = slice(h * d_head, (h + 1) * d_head)
        q = q_all[:, sl]
        k = k_all[:, sl]
        v = v_all[:, sl]

        # scores[i, j] = q[i] . k[j]  (contract last dims; no explicit k.T)
        scores = lax.dot_general(
            q, k, dimension_numbers=(((1,), (1,)), ((), ())),
            preferred_element_type=jnp.float32)                     # (S, S)
        scores = jnp.where(causal, IGNORE, scores)

        # softmax over key positions (denominator via EUP approx reciprocal)
        m = jnp.max(scores, axis=-1, keepdims=True)
        e = jnp.exp(scores - m)
        denom = jnp.sum(e, axis=-1, keepdims=True)
        probs = e * pl.reciprocal(denom, approx=True)

        z_heads.append(jnp.dot(probs, v,
                               preferred_element_type=jnp.float32))  # (S, Dh)

    # Fused output projection: (S, H*Dh) @ (H*Dh, D) + b_O, written once.
    z_cat = jnp.concatenate(z_heads, axis=-1)                        # (S, HD)
    out = jnp.dot(z_cat, wo_ref[...],
                  preferred_element_type=jnp.float32) + bo_ref[...]  # (S, D)
    o_ref[0] = out


def attention_forward(x, W_Q, W_K, W_V, W_O, b_Q, b_K, b_V, b_O):
    B, S, D = x.shape
    H, _, Dh = W_Q.shape
    HD = H * Dh

    # Pre-stack weights in the wrapper (plain XLA, outside the kernel):
    #   W_qkv: (D, 3*H*Dh) such that column block [h*Dh:(h+1)*Dh] of the q/k/v
    #   section equals W_{Q,K,V}[h];  b_qkv matches that ordering.
    def _flat(w):  # (H, D, Dh) -> (D, H*Dh)
        return jnp.transpose(w, (1, 0, 2)).reshape(D, HD)

    W_qkv = jnp.concatenate([_flat(W_Q), _flat(W_K), _flat(W_V)], axis=1)
    b_qkv = jnp.concatenate(
        [b_Q.reshape(HD), b_K.reshape(HD), b_V.reshape(HD)]).reshape(1, 3 * HD)
    W_o2 = W_O.reshape(HD, D)     # (H*Dh, D) — rows ordered (head, d_head)
    b_o2 = b_O.reshape(1, D)

    kernel = functools.partial(_attention_kernel, n_heads=H, d_head=Dh)

    return pl.pallas_call(
        kernel,
        out_shape=jax.ShapeDtypeStruct((B, S, D), jnp.float32),
        grid_spec=pltpu.PrefetchScalarGridSpec(
            num_scalar_prefetch=0,
            grid=(B,),
            in_specs=[
                pl.BlockSpec((1, S, D), lambda b: (b, 0, 0)),    # x
                pl.BlockSpec((D, 3 * HD), lambda b: (0, 0)),     # W_qkv (resident)
                pl.BlockSpec((1, 3 * HD), lambda b: (0, 0)),     # b_qkv
                pl.BlockSpec((HD, D), lambda b: (0, 0)),         # W_O flattened
                pl.BlockSpec((1, D), lambda b: (0, 0)),          # b_O
            ],
            out_specs=pl.BlockSpec((1, S, D), lambda b: (b, 0, 0)),
        ),
        compiler_params=pltpu.CompilerParams(
            dimension_semantics=("parallel",)),
    )(x, W_qkv, b_qkv, W_o2, b_o2)


def attention_reference(x, W_Q, W_K, W_V, W_O, b_Q, b_K, b_V, b_O):
    """Plain-JAX reference matching the PyTorch forward exactly."""
    Dh = W_Q.shape[-1]
    q = jnp.einsum("bpd,hde->bphe", x, W_Q) + b_Q
    k = jnp.einsum("bpd,hde->bphe", x, W_K) + b_K
    v = jnp.einsum("bpd,hde->bphe", x, W_V) + b_V
    scores = jnp.einsum("bqhe,bkhe->bhqk", q, k) / (Dh ** 0.5)
    S = scores.shape[-1]
    mask = jnp.arange(S)[None, :] > jnp.arange(S)[:, None]
    scores = jnp.where(mask[None, None], IGNORE, scores)
    probs = jax.nn.softmax(scores, axis=-1)
    z = jnp.einsum("bhqk,bkhe->bqhe", probs, v)
    return jnp.einsum("bqhe,hed->bqd", z, W_O) + b_O


if __name__ == "__main__":
    # Small config consistent with the module: batch=2, seq=8, d_model=32,
    # n_heads=4, d_head=8, init_range=0.02
    B, S, D, H, Dh = 2, 8, 32, 4, 8
    init_range = 0.02

    key = jax.random.PRNGKey(0)
    kx, kq, kk, kv, ko = jax.random.split(key, 5)

    x = jax.random.normal(kx, (B, S, D), dtype=jnp.float32)
    W_Q = init_range * jax.random.normal(kq, (H, D, Dh), dtype=jnp.float32)
    W_K = init_range * jax.random.normal(kk, (H, D, Dh), dtype=jnp.float32)
    W_V = init_range * jax.random.normal(kv, (H, D, Dh), dtype=jnp.float32)
    W_O = init_range * jax.random.normal(ko, (H, Dh, D), dtype=jnp.float32)
    b_Q = jnp.zeros((H, Dh), dtype=jnp.float32)
    b_K = jnp.zeros((H, Dh), dtype=jnp.float32)
    b_V = jnp.zeros((H, Dh), dtype=jnp.float32)
    b_O = jnp.zeros((D,), dtype=jnp.float32)

    out = attention_forward(x, W_Q, W_K, W_V, W_O, b_Q, b_K, b_V, b_O)
    out = jax.block_until_ready(out)

    ref = attention_reference(x, W_Q, W_K, W_V, W_O, b_Q, b_K, b_V, b_O)
    assert out.shape == (B, S, D)
    # Tolerance leaves headroom for the EUP approx-reciprocal softmax denom.
    assert jnp.allclose(out, ref, atol=1e-4, rtol=1e-3), "mismatch vs reference"

    print("KERNEL_OK")
</pallas_src>

<mosaic_0001>
module attributes {stable_mosaic.version = 11 : i64} {
  func.func @_attention_kernel(%arg0: i32, %arg1: memref<1x8x32xf32, #tpu.memory_space<vmem>>, %arg2: memref<32x96xf32, #tpu.memory_space<vmem>>, %arg3: memref<1x96xf32, #tpu.memory_space<vmem>>, %arg4: memref<32x32xf32, #tpu.memory_space<vmem>>, %arg5: memref<1x32xf32, #tpu.memory_space<vmem>>, %arg6: memref<1x8x32xf32, #tpu.memory_space<vmem>>) attributes {dimension_semantics = [#tpu.dimension_semantics<parallel>], iteration_bounds = array<i64: 2>, scalar_prefetch = 0 : i64, scratch_operands = 0 : i64, tpu.core_type = #tpu.core_type<tc>, window_params = [{transform_indices = @transform_0, window_bounds = array<i64: 1, 8, 32>}, {pipeline_mode = #tpu.pipeline_mode<synchronous>, transform_indices = @transform_1, window_bounds = array<i64: 32, 96>}, {pipeline_mode = #tpu.pipeline_mode<synchronous>, transform_indices = @transform_2, window_bounds = array<i64: 1, 96>}, {pipeline_mode = #tpu.pipeline_mode<synchronous>, transform_indices = @transform_3, window_bounds = array<i64: 32, 32>}, {pipeline_mode = #tpu.pipeline_mode<synchronous>, transform_indices = @transform_4, window_bounds = array<i64: 1, 32>}, {transform_indices = @transform_5, window_bounds = array<i64: 1, 8, 32>}]} {
    %c0 = arith.constant 0 : index
    %c0_0 = arith.constant 0 : index
    %c0_1 = arith.constant 0 : index
    %0 = vector.load %arg1[%c0, %c0_0, %c0_1] : memref<1x8x32xf32, #tpu.memory_space<vmem>>, vector<1x8x32xf32>
    %1 = vector.shape_cast %0 : vector<1x8x32xf32> to vector<8x32xf32>
    %c0_2 = arith.constant 0 : index
    %c0_3 = arith.constant 0 : index
    %2 = vector.load %arg2[%c0_2, %c0_3] : memref<32x96xf32, #tpu.memory_space<vmem>>, vector<32x96xf32>
    %cst = arith.constant dense<0.000000e+00> : vector<8x96xf32>
    %3 = tpu.matmul %1, %2, %cst {dimension_numbers = #tpu.dot_dimension_numbers<[1], [0], [0], [1], [0, 0, 1, 1], [], []>} : vector<8x32xf32>, vector<32x96xf32>, vector<8x96xf32> -> vector<8x96xf32>
    %c0_4 = arith.constant 0 : index
    %c0_5 = arith.constant 0 : index
    %4 = vector.load %arg3[%c0_4, %c0_5] : memref<1x96xf32, #tpu.memory_space<vmem>>, vector<1x96xf32>
    %5 = vector.broadcast %4 : vector<1x96xf32> to vector<8x96xf32>
    %6 = arith.addf %3, %5 : vector<8x96xf32>
    %7 = vector.extract_strided_slice %6 {offsets = [0, 0], sizes = [8, 32], strides = [1, 1]} : vector<8x96xf32> to vector<8x32xf32>
    %cst_6 = arith.constant 0.353553385 : f32
    %8 = vector.broadcast %cst_6 : f32 to vector<8x32xf32>
    %9 = arith.mulf %7, %8 : vector<8x32xf32>
    %10 = vector.extract_strided_slice %6 {offsets = [0, 32], sizes = [8, 32], strides = [1, 1]} : vector<8x96xf32> to vector<8x32xf32>
    %11 = vector.extract_strided_slice %6 {offsets = [0, 64], sizes = [8, 32], strides = [1, 1]} : vector<8x96xf32> to vector<8x32xf32>
    %12 = tpu.iota {dimensions = array<i32: 0>} : vector<8x8xi32>
    %13 = tpu.iota {dimensions = array<i32: 1>} : vector<8x8xi32>
    %14 = arith.cmpi sgt, %13, %12 : vector<8x8xi32>
    %15 = vector.extract_strided_slice %9 {offsets = [0, 0], sizes = [8, 8], strides = [1, 1]} : vector<8x32xf32> to vector<8x8xf32>
    %16 = vector.extract_strided_slice %10 {offsets = [0, 0], sizes = [8, 8], strides = [1, 1]} : vector<8x32xf32> to vector<8x8xf32>
    %17 = vector.extract_strided_slice %11 {offsets = [0, 0], sizes = [8, 8], strides = [1, 1]} : vector<8x32xf32> to vector<8x8xf32>
    %cst_7 = arith.constant dense<0.000000e+00> : vector<8x8xf32>
    %18 = tpu.matmul %15, %16, %cst_7 {dimension_numbers = #tpu.dot_dimension_numbers<[1], [1], [0], [0], [0, 0, 1, 0], [], []>} : vector<8x8xf32>, vector<8x8xf32>, vector<8x8xf32> -> vector<8x8xf32>
    %cst_8 = arith.constant -1.000000e+08 : f32
    %19 = vector.broadcast %cst_8 : f32 to vector<8x8xf32>
    %20 = arith.select %14, %19, %18 : vector<8x8xi1>, vector<8x8xf32>
    %cst_9 = arith.constant dense<0xFF800000> : vector<8xf32>
    %21 = vector.multi_reduction <maximumf>, %20, %cst_9 [1] : vector<8x8xf32> to vector<8xf32>
    %22 = vector.shape_cast %21 : vector<8xf32> to vector<8x1xf32>
    %23 = vector.broadcast %22 : vector<8x1xf32> to vector<8x8xf32>
    %24 = arith.subf %20, %23 : vector<8x8xf32>
    %25 = math.exp %24 : vector<8x8xf32>
    %cst_10 = arith.constant dense<0.000000e+00> : vector<8xf32>
    %26 = vector.multi_reduction <add>, %25, %cst_10 [1] : vector<8x8xf32> to vector<8xf32>
    %27 = vector.shape_cast %26 : vector<8xf32> to vector<8x1xf32>
    %28 = tpu.reciprocal %27 {approx = true} : vector<8x1xf32> -> vector<8x1xf32>
    %29 = vector.broadcast %28 : vector<8x1xf32> to vector<8x8xf32>
    %30 = arith.mulf %25, %29 : vector<8x8xf32>
    %cst_11 = arith.constant dense<0.000000e+00> : vector<8x8xf32>
    %31 = tpu.matmul %30, %17, %cst_11 {dimension_numbers = #tpu.dot_dimension_numbers<[1], [0], [0], [1], [0, 0, 1, 1], [], []>} : vector<8x8xf32>, vector<8x8xf32>, vector<8x8xf32> -> vector<8x8xf32>
    %32 = vector.extract_strided_slice %9 {offsets = [0, 8], sizes = [8, 8], strides = [1, 1]} : vector<8x32xf32> to vector<8x8xf32>
    %33 = vector.extract_strided_slice %10 {offsets = [0, 8], sizes = [8, 8], strides = [1, 1]} : vector<8x32xf32> to vector<8x8xf32>
    %34 = vector.extract_strided_slice %11 {offsets = [0, 8], sizes = [8, 8], strides = [1, 1]} : vector<8x32xf32> to vector<8x8xf32>
    %cst_12 = arith.constant dense<0.000000e+00> : vector<8x8xf32>
    %35 = tpu.matmul %32, %33, %cst_12 {dimension_numbers = #tpu.dot_dimension_numbers<[1], [1], [0], [0], [0, 0, 1, 0], [], []>} : vector<8x8xf32>, vector<8x8xf32>, vector<8x8xf32> -> vector<8x8xf32>
    %cst_13 = arith.constant -1.000000e+08 : f32
    %36 = vector.broadcast %cst_13 : f32 to vector<8x8xf32>
    %37 = arith.select %14, %36, %35 : vector<8x8xi1>, vector<8x8xf32>
    %cst_14 = arith.constant dense<0xFF800000> : vector<8xf32>
    %38 = vector.multi_reduction <maximumf>, %37, %cst_14 [1] : vector<8x8xf32> to vector<8xf32>
    %39 = vector.shape_cast %38 : vector<8xf32> to vector<8x1xf32>
    %40 = vector.broadcast %39 : vector<8x1xf32> to vector<8x8xf32>
    %41 = arith.subf %37, %40 : vector<8x8xf32>
    %42 = math.exp %41 : vector<8x8xf32>
    %cst_15 = arith.constant dense<0.000000e+00> : vector<8xf32>
    %43 = vector.multi_reduction <add>, %42, %cst_15 [1] : vector<8x8xf32> to vector<8xf32>
    %44 = vector.shape_cast %43 : vector<8xf32> to vector<8x1xf32>
    %45 = tpu.reciprocal %44 {approx = true} : vector<8x1xf32> -> vector<8x1xf32>
    %46 = vector.broadcast %45 : vector<8x1xf32> to vector<8x8xf32>
    %47 = arith.mulf %42, %46 : vector<8x8xf32>
    %cst_16 = arith.constant dense<0.000000e+00> : vector<8x8xf32>
    %48 = tpu.matmul %47, %34, %cst_16 {dimension_numbers = #tpu.dot_dimension_numbers<[1], [0], [0], [1], [0, 0, 1, 1], [], []>} : vector<8x8xf32>, vector<8x8xf32>, vector<8x8xf32> -> vector<8x8xf32>
    %49 = vector.extract_strided_slice %9 {offsets = [0, 16], sizes = [8, 8], strides = [1, 1]} : vector<8x32xf32> to vector<8x8xf32>
    %50 = vector.extract_strided_slice %10 {offsets = [0, 16], sizes = [8, 8], strides = [1, 1]} : vector<8x32xf32> to vector<8x8xf32>
    %51 = vector.extract_strided_slice %11 {offsets = [0, 16], sizes = [8, 8], strides = [1, 1]} : vector<8x32xf32> to vector<8x8xf32>
    %cst_17 = arith.constant dense<0.000000e+00> : vector<8x8xf32>
    %52 = tpu.matmul %49, %50, %cst_17 {dimension_numbers = #tpu.dot_dimension_numbers<[1], [1], [0], [0], [0, 0, 1, 0], [], []>} : vector<8x8xf32>, vector<8x8xf32>, vector<8x8xf32> -> vector<8x8xf32>
    %cst_18 = arith.constant -1.000000e+08 : f32
    %53 = vector.broadcast %cst_18 : f32 to vector<8x8xf32>
    %54 = arith.select %14, %53, %52 : vector<8x8xi1>, vector<8x8xf32>
    %cst_19 = arith.constant dense<0xFF800000> : vector<8xf32>
    %55 = vector.multi_reduction <maximumf>, %54, %cst_19 [1] : vector<8x8xf32> to vector<8xf32>
    %56 = vector.shape_cast %55 : vector<8xf32> to vector<8x1xf32>
    %57 = vector.broadcast %56 : vector<8x1xf32> to vector<8x8xf32>
    %58 = arith.subf %54, %57 : vector<8x8xf32>
    %59 = math.exp %58 : vector<8x8xf32>
    %cst_20 = arith.constant dense<0.000000e+00> : vector<8xf32>
    %60 = vector.multi_reduction <add>, %59, %cst_20 [1] : vector<8x8xf32> to vector<8xf32>
    %61 = vector.shape_cast %60 : vector<8xf32> to vector<8x1xf32>
    %62 = tpu.reciprocal %61 {approx = true} : vector<8x1xf32> -> vector<8x1xf32>
    %63 = vector.broadcast %62 : vector<8x1xf32> to vector<8x8xf32>
    %64 = arith.mulf %59, %63 : vector<8x8xf32>
    %cst_21 = arith.constant dense<0.000000e+00> : vector<8x8xf32>
    %65 = tpu.matmul %64, %51, %cst_21 {dimension_numbers = #tpu.dot_dimension_numbers<[1], [0], [0], [1], [0, 0, 1, 1], [], []>} : vector<8x8xf32>, vector<8x8xf32>, vector<8x8xf32> -> vector<8x8xf32>
    %66 = vector.extract_strided_slice %9 {offsets = [0, 24], sizes = [8, 8], strides = [1, 1]} : vector<8x32xf32> to vector<8x8xf32>
    %67 = vector.extract_strided_slice %10 {offsets = [0, 24], sizes = [8, 8], strides = [1, 1]} : vector<8x32xf32> to vector<8x8xf32>
    %68 = vector.extract_strided_slice %11 {offsets = [0, 24], sizes = [8, 8], strides = [1, 1]} : vector<8x32xf32> to vector<8x8xf32>
    %cst_22 = arith.constant dense<0.000000e+00> : vector<8x8xf32>
    %69 = tpu.matmul %66, %67, %cst_22 {dimension_numbers = #tpu.dot_dimension_numbers<[1], [1], [0], [0], [0, 0, 1, 0], [], []>} : vector<8x8xf32>, vector<8x8xf32>, vector<8x8xf32> -> vector<8x8xf32>
    %cst_23 = arith.constant -1.000000e+08 : f32
    %70 = vector.broadcast %cst_23 : f32 to vector<8x8xf32>
    %71 = arith.select %14, %70, %69 : vector<8x8xi1>, vector<8x8xf32>
    %cst_24 = arith.constant dense<0xFF800000> : vector<8xf32>
    %72 = vector.multi_reduction <maximumf>, %71, %cst_24 [1] : vector<8x8xf32> to vector<8xf32>
    %73 = vector.shape_cast %72 : vector<8xf32> to vector<8x1xf32>
    %74 = vector.broadcast %73 : vector<8x1xf32> to vector<8x8xf32>
    %75 = arith.subf %71, %74 : vector<8x8xf32>
    %76 = math.exp %75 : vector<8x8xf32>
    %cst_25 = arith.constant dense<0.000000e+00> : vector<8xf32>
    %77 = vector.multi_reduction <add>, %76, %cst_25 [1] : vector<8x8xf32> to vector<8xf32>
    %78 = vector.shape_cast %77 : vector<8xf32> to vector<8x1xf32>
    %79 = tpu.reciprocal %78 {approx = true} : vector<8x1xf32> -> vector<8x1xf32>
    %80 = vector.broadcast %79 : vector<8x1xf32> to vector<8x8xf32>
    %81 = arith.mulf %76, %80 : vector<8x8xf32>
    %cst_26 = arith.constant dense<0.000000e+00> : vector<8x8xf32>
    %82 = tpu.matmul %81, %68, %cst_26 {dimension_numbers = #tpu.dot_dimension_numbers<[1], [0], [0], [1], [0, 0, 1, 1], [], []>} : vector<8x8xf32>, vector<8x8xf32>, vector<8x8xf32> -> vector<8x8xf32>
    %83 = tpu.concatenate %31, %48, %65, %82 in 1 : vector<8x8xf32>, vector<8x8xf32>, vector<8x8xf32>, vector<8x8xf32> -> vector<8x32xf32>
    %c0_27 = arith.constant 0 : index
    %c0_28 = arith.constant 0 : index
    %84 = vector.load %arg4[%c0_27, %c0_28] : memref<32x32xf32, #tpu.memory_space<vmem>>, vector<32x32xf32>
    %cst_29 = arith.constant dense<0.000000e+00> : vector<8x32xf32>
    %85 = tpu.matmul %83, %84, %cst_29 {dimension_numbers = #tpu.dot_dimension_numbers<[1], [0], [0], [1], [0, 0, 1, 1], [], []>} : vector<8x32xf32>, vector<32x32xf32>, vector<8x32xf32> -> vector<8x32xf32>
    %c0_30 = arith.constant 0 : index
    %c0_31 = arith.constant 0 : index
    %86 = vector.load %arg5[%c0_30, %c0_31] : memref<1x32xf32, #tpu.memory_space<vmem>>, vector<1x32xf32>
    %87 = vector.broadcast %86 : vector<1x32xf32> to vector<8x32xf32>
    %88 = arith.addf %85, %87 : vector<8x32xf32>
    %c0_32 = arith.constant 0 : index
    %c0_33 = arith.constant 0 : index
    %c0_34 = arith.constant 0 : index
    %89 = vector.load %arg6[%c0_32, %c0_33, %c0_34] : memref<1x8x32xf32, #tpu.memory_space<vmem>>, vector<1x8x32xf32>
    %90 = vector.shape_cast %89 : vector<1x8x32xf32> to vector<8x32xf32>
    %91 = vector.shape_cast %88 : vector<8x32xf32> to vector<1x8x32xf32>
    tpu.vector_store %arg6[%c0_32, %c0_33, %c0_34], %91 {strides = array<i32>} : memref<1x8x32xf32, #tpu.memory_space<vmem>>, vector<1x8x32xf32>,
    return
  }
  func.func @transform_0(%arg0: i32) -> (i32, i32, i32) {
    %c0_i32 = arith.constant 0 : i32
    %c0_i32_0 = arith.constant 0 : i32
    %c0_i32_1 = arith.constant 0 : i32
    return %arg0, %c0_i32, %c0_i32_0 : i32, i32, i32
  }
  func.func @transform_1(%arg0: i32) -> (i32, i32) {
    %c0_i32 = arith.constant 0 : i32
    %c0_i32_0 = arith.constant 0 : i32
    %c0_i32_1 = arith.constant 0 : i32
    return %c0_i32, %c0_i32_0 : i32, i32
  }
  func.func @transform_2(%arg0: i32) -> (i32, i32) {
    %c0_i32 = arith.constant 0 : i32
    %c0_i32_0 = arith.constant 0 : i32
    %c0_i32_1 = arith.constant 0 : i32
    return %c0_i32, %c0_i32_0 : i32, i32
  }
  func.func @transform_3(%arg0: i32) -> (i32, i32) {
    %c0_i32 = arith.constant 0 : i32
    %c0_i32_0 = arith.constant 0 : i32
    %c0_i32_1 = arith.constant 0 : i32
    return %c0_i32, %c0_i32_0 : i32, i32
  }
  func.func @transform_4(%arg0: i32) -> (i32, i32) {
    %c0_i32 = arith.constant 0 : i32
    %c0_i32_0 = arith.constant 0 : i32
    %c0_i32_1 = arith.constant 0 : i32
    return %c0_i32, %c0_i32_0 : i32, i32
  }
  func.func @transform_5(%arg0: i32) -> (i32, i32, i32) {
    %c0_i32 = arith.constant 0 : i32
    %c0_i32_0 = arith.constant 0 : i32
    %c0_i32_1 = arith.constant 0 : i32
    return %arg0, %c0_i32, %c0_i32_0 : i32, i32, i32
  }
}

</mosaic_0001>

<llo_original>
// kernel: tpu_custom_call.1
$region0: #{tpu_custom_call.1}
  #allocation0 [shape = 'u32[]', space=smem, size = 0x4, offset = 0x4, fixed_abs, tag = 'smem constant byte address 0x4 - core index']
  #allocation1 [shape = 'u32[144,128]{1,0:T(1,128)}', space=vmem, size = 0x12000, scoped, tag = 'internal scratch']
  %s0 = inlined_call_operand.hbm [shape: f32[2,8,32], index: 0, kind: input, shape index: {}]
  %s1 = inlined_call_operand.hbm [shape: f32[32,96], index: 1, kind: input, shape index: {}]
  %s2 = inlined_call_operand.vmem [shape: f32[1,96], index: 2, kind: input, shape index: {}]
  %s3 = inlined_call_operand.hbm [shape: f32[32,32], index: 3, kind: input, shape index: {}]
  %s4 = inlined_call_operand.vmem [shape: f32[1,32], index: 4, kind: input, shape index: {}]
  %s5 = inlined_call_operand.hbm [shape: f32[2,8,32], index: 5, kind: output, shape index: {}]
  %s6 = sld [smem:[#allocation0]]
  $region65: #{tpu_custom_call.1} parent=0
    _
  %s8 = ssub.s32 1, %s6
  %s9 = scalar_select 0, %s8, %s6
  $region1: #{tpu_custom_call.1} parent=0
    #allocation2 [shape = 'u8[8192]{0}', space=vmem, size = 0x2000, scoped, tag = 'input window, operand 0']
    #allocation3 [shape = 's32[2]{0}', space=sflag, size = 0x8, scoped, tag = 'scoped memory for tpu_custom_call.1']
    #allocation4 [shape = 's32[2]{0}', space=sflag, size = 0x8, scoped, tag = 'scoped memory for tpu_custom_call.1']
    #allocation5 [shape = 'u8[16384]{0}', space=vmem, size = 0x4000, scoped, tag = 'input window, operand 1, single buffered']
    #allocation6 [shape = 's32[1]{0}', space=sflag, size = 0x4, scoped, tag = 'scoped memory for tpu_custom_call.1']
    #allocation7 [shape = 'u8[16384]{0}', space=vmem, size = 0x4000, scoped, tag = 'input window, operand 3, single buffered']
    #allocation8 [shape = 'u8[8192]{0}', space=vmem, size = 0x2000, scoped, tag = 'output window, operand 0']
    %10 = vsyncpa [#allocation3], 0
    %s11 = scalar_lea.sflag [#allocation3], 1
    %12 = vsyncpa %s11, 0
    %13 = vsyncpa [#allocation6], 0
    %14 = vsyncpa [#allocation4], 0
    %s15 = scalar_lea.sflag [#allocation4], 1
    %16 = vsyncpa %s15, 0
    loop: start=0, step=1, limit=4
    $region2: #{tpu_custom_call.1} parent=1 // loop_pre_header
      _
    $region3: #{tpu_custom_call.1} parent=1 // loop_header
      %s18 = sphi 0, %s22
      %p19 = scmp.ge.s32.totalorder %s18, 4
      %s28 = sphi 0, %s30
      %s31 = sphi 0, %s28
      %s32 = sphi 0, %s31
      %s48 = sphi 0, %s32
      %s52 = sphi 0, %s52
      %s54 = sphi 0, %s52
      %s55 = sphi 0, %s54
      %s69 = sphi 0, %s55
      %s73 = sphi 0, %s73
      %s75 = sphi 0, %s73
      %s76 = sphi 0, %s75
      %s90 = sphi 0, %s76
      %s94 = sphi 0, %s94
      %s96 = sphi 0, %s94
      %s97 = sphi 0, %s96
      %s111 = sphi 0, %s97
      %s115 = sphi 0, %s115
      %s117 = sphi 0, %s115
      %s118 = sphi 0, %s117
      %s132 = sphi 0, %s118
      %s138 = sphi 0, %s140
      %s141 = sphi 0, %s138
      %s142 = sphi 0, %s141
      %s158 = sphi 0, %s142
    $region4: #{tpu_custom_call.1} parent=1 // loop_header_branch
      %21 = sbr.rel (%p19) target = $region8
    $region5: #{tpu_custom_call.1} parent=1 // loop_body
      %s23 = ssub.s32 %s18, 1
      %s24 = ssub.s32 %s18, 2
      %s25 = sadd.s32 %s18, 1
      %s26 = ssub.s32 %s18, %s25
      %p27 = scmp.eq.s32.totalorder %s26, 0
      %s29 = sadd.s32 %s28, 1
      %s30 = scalar_select %p27, %s28, %s29
      %p33 = pneg %p27
      %p34 = scmp.eq.s32.totalorder %s18, 1
      %p35 = por %p33, %p34
      %p36 = scmp.ne.s32.totalorder %s28, %s31
      %p37 = scmp.eq.s32.totalorder %s18, 0
      %p38 = por %p36, %p37
      %p39 = scmp.ne.s32.totalorder %s28, %s31
      %p40 = scmp.eq.s32.totalorder %s23, 1
      %p41 = por %p39, %p40
      %p42 = scmp.ne.s32.totalorder %s31, %s32
      %p43 = scmp.eq.s32.totalorder %s23, 0
      %p44 = por %p42, %p43
      %p45 = scmp.ne.s32.totalorder %s31, %s32
      %p46 = scmp.eq.s32.totalorder %s24, 1
      %p47 = por %p45, %p46
      %p49 = scmp.ne.s32.totalorder %s32, %s48
      %p50 = scmp.eq.s32.totalorder %s24, 0
      %p51 = por %p49, %p50
      %s53 = sadd.s32 %s52, 1
      %p56 = scmp.eq.s32.totalorder %s18, 1
      %p57 = scmp.ne.s32.totalorder %s52, %s54
      %p58 = scmp.eq.s32.totalorder %s18, 0
      %p59 = por %p57, %p58
      %p60 = scmp.ne.s32.totalorder %s52, %s54
      %p61 = scmp.eq.s32.totalorder %s23, 1
      %p62 = por %p60, %p61
      %p63 = scmp.ne.s32.totalorder %s54, %s55
      %p64 = scmp.eq.s32.totalorder %s23, 0
      %p65 = por %p63, %p64
      %p66 = scmp.ne.s32.totalorder %s54, %s55
      %p67 = scmp.eq.s32.totalorder %s24, 1
      %p68 = por %p66, %p67
      %p70 = scmp.ne.s32.totalorder %s55, %s69
      %p71 = scmp.eq.s32.totalorder %s24, 0
      %p72 = por %p70, %p71
      %s74 = sadd.s32 %s73, 1
      %p77 = scmp.eq.s32.totalorder %s18, 1
      %p78 = scmp.ne.s32.totalorder %s73, %s75
      %p79 = scmp.eq.s32.totalorder %s18, 0
      %p80 = por %p78, %p79
      %p81 = scmp.ne.s32.totalorder %s73, %s75
      %p82 = scmp.eq.s32.totalorder %s23, 1
      %p83 = por %p81, %p82
      %p84 = scmp.ne.s32.totalorder %s75, %s76
      %p85 = scmp.eq.s32.totalorder %s23, 0
      %p86 = por %p84, %p85
      %p87 = scmp.ne.s32.totalorder %s75, %s76
      %p88 = scmp.eq.s32.totalorder %s24, 1
      %p89 = por %p87, %p88
      %p91 = scmp.ne.s32.totalorder %s76, %s90
      %p92 = scmp.eq.s32.totalorder %s24, 0
      %p93 = por %p91, %p92
      %s95 = sadd.s32 %s94, 1
      %p98 = scmp.eq.s32.totalorder %s18, 1
      %p99 = scmp.ne.s32.totalorder %s94, %s96
      %p100 = scmp.eq.s32.totalorder %s18, 0
      %p101 = por %p99, %p100
      %p102 = scmp.ne.s32.totalorder %s94, %s96
      %p103 = scmp.eq.s32.totalorder %s23, 1
      %p104 = por %p102, %p103
      %p105 = scmp.ne.s32.totalorder %s96, %s97
      %p106 = scmp.eq.s32.totalorder %s23, 0
      %p107 = por %p105, %p106
      %p108 = scmp.ne.s32.totalorder %s96, %s97
      %p109 = scmp.eq.s32.totalorder %s24, 1
      %p110 = por %p108, %p109
      %p112 = scmp.ne.s32.totalorder %s97, %s111
      %p113 = scmp.eq.s32.totalorder %s24, 0
      %p114 = por %p112, %p113
      %s116 = sadd.s32 %s115, 1
      %p119 = scmp.eq.s32.totalorder %s18, 1
      %p120 = scmp.ne.s32.totalorder %s115, %s117
      %p121 = scmp.eq.s32.totalorder %s18, 0
      %p122 = por %p120, %p121
      %p123 = scmp.ne.s32.totalorder %s115, %s117
      %p124 = scmp.eq.s32.totalorder %s23, 1
      %p125 = por %p123, %p124
      %p126 = scmp.ne.s32.totalorder %s117, %s118
      %p127 = scmp.eq.s32.totalorder %s23, 0
      %p128 = por %p126, %p127
      %p129 = scmp.ne.s32.totalorder %s117, %s118
      %p130 = scmp.eq.s32.totalorder %s24, 1
      %p131 = por %p129, %p130
      %p133 = scmp.ne.s32.totalorder %s118, %s132
      %p134 = scmp.eq.s32.totalorder %s24, 0
      %p135 = por %p133, %p134
      %s136 = ssub.s32 %s18, %s25
      %p137 = scmp.eq.s32.totalorder %s136, 0
      %s139 = sadd.s32 %s138, 1
      %s140 = scalar_select %p137, %s138, %s139
      %p143 = pneg %p137
      %p144 = scmp.eq.s32.totalorder %s18, 1
      %p145 = por %p143, %p144
      %p146 = scmp.ne.s32.totalorder %s138, %s141
      %p147 = scmp.eq.s32.totalorder %s18, 0
      %p148 = por %p146, %p147
      %p149 = scmp.ne.s32.totalorder %s138, %s141
      %p150 = scmp.eq.s32.totalorder %s23, 1
      %p151 = por %p149, %p150
      %p152 = scmp.ne.s32.totalorder %s141, %s142
      %p153 = scmp.eq.s32.totalorder %s23, 0
      %p154 = por %p152, %p153
      %p155 = scmp.ne.s32.totalorder %s141, %s142
      %p156 = scmp.eq.s32.totalorder %s24, 1
      %p157 = por %p155, %p156
      %p159 = scmp.ne.s32.totalorder %s142, %s158
      %p160 = scmp.eq.s32.totalorder %s24, 0
      %p161 = por %p159, %p160
      %p162 = scmp.le.s32.totalorder 1, %s18
      %p163 = scmp.lt.s32.totalorder %s18, 3
      %p164 = pnand %p162, %p163
      %p165 = pneg %p164
      // Predicated region
      $region9: #{tpu_custom_call.1} parent=5 // pred_check
        _
      $region10: #{tpu_custom_call.1} parent=5 // pred_check_branch
        %167 = sbr.rel (%p164) target = $region12
      $region11: #{tpu_custom_call.1} parent=5 // pred_region
        %s168 = ssub.s32 %s18, 1
        // Predicated region
        $region13: #{tpu_custom_call.1} parent=11 // pred_check
          %p169 = pneg %p65
        $region14: #{tpu_custom_call.1} parent=11 // pred_check_branch
          %171 = sbr.rel (%p169) target = $region16
        $region15: #{tpu_custom_call.1} parent=11 // pred_region
          %s173 = ssub.s32 512, 512
          %174 = vsyncadd [#allocation6], %s173
          %s175 = sshll.u32 [#allocation5], 4
          %s176 = int_to_ptr.vmem [resolvable:$true] %s175
          %181 = dma.hbm_to_vmem [thread:$0]  %s1, 512, %s176, [#allocation6], 128, 128, 8
        $region16: #{tpu_custom_call.1} parent=11 // pred_fallthru
          _
        // Predicated region
        $region17: #{tpu_custom_call.1} parent=11 // pred_check
          %p182 = pneg %p86
        $region18: #{tpu_custom_call.1} parent=11 // pred_check_branch
          %184 = sbr.rel (%p182) target = $region20
        $region19: #{tpu_custom_call.1} parent=11 // pred_region
          _
        $region20: #{tpu_custom_call.1} parent=11 // pred_fallthru
          _
        // Predicated region
        $region21: #{tpu_custom_call.1} parent=11 // pred_check
          %p185 = pneg %p107
        $region22: #{tpu_custom_call.1} parent=11 // pred_check_branch
          %187 = sbr.rel (%p185) target = $region24
        $region23: #{tpu_custom_call.1} parent=11 // pred_region
          %s189 = ssub.s32 512, 512
          %190 = vsyncadd [#allocation6], %s189
          %s191 = sshll.u32 [#allocation7], 4
          %s192 = int_to_ptr.vmem [resolvable:$true] %s191
          %197 = dma.hbm_to_vmem [thread:$0]  %s3, 512, %s192, [#allocation6], 128, 128, 8
        $region24: #{tpu_custom_call.1} parent=11 // pred_fallthru
          _
        // Predicated region
        $region25: #{tpu_custom_call.1} parent=11 // pred_check
          %p198 = pneg %p128
        $region26: #{tpu_custom_call.1} parent=11 // pred_check_branch
          %200 = sbr.rel (%p198) target = $region28
        $region27: #{tpu_custom_call.1} parent=11 // pred_region
          _
        $region28: #{tpu_custom_call.1} parent=11 // pred_fallthru
          _
      $region12: #{tpu_custom_call.1} parent=5 // pred_fallthru
        _
      %p201 = scmp.lt.s32.totalorder %s18, 2
      // Predicated region
      $region29: #{tpu_custom_call.1} parent=5 // pred_check
        %p202 = pneg %p201
      $region30: #{tpu_custom_call.1} parent=5 // pred_check_branch
        %204 = sbr.rel (%p202) target = $region32
      $region31: #{tpu_custom_call.1} parent=5 // pred_region
        // Predicated region
        $region33: #{tpu_custom_call.1} parent=31 // pred_check
          %p205 = pneg %p38
        $region34: #{tpu_custom_call.1} parent=31 // pred_check_branch
          %207 = sbr.rel (%p205) target = $region36
        $region35: #{tpu_custom_call.1} parent=31 // pred_region
          %s208 = sand.u32 %s28, 1
          %s209 = scalar_lea.sflag [#allocation3], %s208
          %s210 = sand.u32 %s28, 1
          %s211 = smul.addr %s210, 8
          %s212 = scalar_lea.vmem [#allocation2], %s211
          %s214 = ssub.s32 128, 128
          %215 = vsyncadd %s209, %s214
          %s216 = smul.addr %s18, 128
          %s217 = scalar_lea.hbm %s0, %s216
          %s219 = sshll.u32 %s212, 4
          %s220 = int_to_ptr.vmem [resolvable:$true] %s219
          %222 = dma.hbm_to_vmem [thread:$0]  %s217, 128, %s220, %s209
        $region36: #{tpu_custom_call.1} parent=31 // pred_fallthru
          _
      $region32: #{tpu_custom_call.1} parent=5 // pred_fallthru
        _
      %p223 = scmp.le.s32.totalorder 1, %s18
      %p224 = scmp.lt.s32.totalorder %s18, 3
      %p225 = pnand %p223, %p224
      %p226 = pneg %p225
      // Predicated region
      $region37: #{tpu_custom_call.1} parent=5 // pred_check
        _
      $region38: #{tpu_custom_call.1} parent=5 // pred_check_branch
        %228 = sbr.rel (%p225) target = $region40
      $region39: #{tpu_custom_call.1} parent=5 // pred_region
        %s229 = ssub.s32 %s18, 1
        %s230 = sand.u32 %s31, 1
        %s231 = scalar_lea.sflag [#allocation3], %s230
        %s232 = sand.u32 %s31, 1
        %s233 = smul.addr %s232, 8
        %s234 = scalar_lea.vmem [#allocation2], %s233
        // Predicated region
        $region41: #{tpu_custom_call.1} parent=39 // pred_check
          %p235 = pneg %p44
        $region42: #{tpu_custom_call.1} parent=39 // pred_check_branch
          %237 = sbr.rel (%p235) target = $region44
        $region43: #{tpu_custom_call.1} parent=39 // pred_region
          %238 = dma.done %s231, 128
        $region44: #{tpu_custom_call.1} parent=39 // pred_fallthru
          _
        // Predicated region
        $region45: #{tpu_custom_call.1} parent=39 // pred_check
          %p239 = pneg %p65
        $region46: #{tpu_custom_call.1} parent=39 // pred_check_branch
          %241 = sbr.rel (%p239) target = $region48
        $region47: #{tpu_custom_call.1} parent=39 // pred_region
          %242 = dma.done [#allocation6], 512
        $region48: #{tpu_custom_call.1} parent=39 // pred_fallthru
          _
        // Predicated region
        $region49: #{tpu_custom_call.1} parent=39 // pred_check
          %p243 = pneg %p107
        $region50: #{tpu_custom_call.1} parent=39 // pred_check_branch
          %245 = sbr.rel (%p243) target = $region52
        $region51: #{tpu_custom_call.1} parent=39 // pred_region
          %246 = dma.done [#allocation6], 512
        $region52: #{tpu_custom_call.1} parent=39 // pred_fallthru
          _
        %s247 = sand.u32 %s31, 1
        %s248 = scalar_lea.sflag [#allocation3], %s247
        %s249 = sand.u32 %s31, 1
        %s250 = smul.addr %s249, 8
        %s251 = scalar_lea.vmem [#allocation2], %s250
        %p252 = pneg %p44
        %p253 = pneg %p41
        %p254 = pneg %p65
        %p255 = pneg %p62
        %p256 = pneg %p86
        %p257 = pneg %p83
        %p258 = pneg %p107
        %p259 = pneg %p104
        %p260 = pneg %p128
        %p261 = pneg %p125
        %p262 = pneg %p154
        %p263 = pneg %p151
        %s264 = sand.u32 %s141, 1
        %s265 = scalar_lea.sflag [#allocation4], %s264
        %s266 = sand.u32 %s141, 1
        %s267 = smul.addr %s266, 8
        %s268 = scalar_lea.vmem [#allocation8], %s267
        %v269 = vld [vmem:[%s234] sm:$0xff]
        %v270 = vld [vmem:[#allocation5] sm:$0xff]
        %v271 = vld [vmem:[#allocation5 + $0x8] sm:$0xff]
        %v272 = vld [vmem:[#allocation5 + $0x10] sm:$0xff]
        %v273 = vld [vmem:[#allocation5 + $0x18] sm:$0xff]
        %v274 = vld [vmem:[%s2] sm:$0x1]
        %v276 = vlaneseq
        %v277 = vshrl.u32 %v276, 7
        %v278 = vsub.s32 0, %v277
        %v279 = vrot.slane %v274, %v278
        %vm281 = vcmask 261120
        %v283 = vsel %vm281, %v269, 0
        %285 = vmatprep.subr.mxu0 0.0
        %286 = vmatpush1.msra.mxu0 %v270
        %287 = vmatprep.subr.mxu0 0.0
        %288 = vmatpush1.msra.mxu0 %v271
        %289 = vmatprep.subr.mxu0 0.0
        %290 = vmatpush1.msra.mxu0 %v272
        %291 = vmatprep.subr.mxu0 0.0
        %292 = vmatpush1.msra.mxu0 %v273
        %293 = vmatprep.subr.mxu0 0.0
        %294 = vmatpush1.msra.mxu0 0.0
        %295 = vmatprep.subr.mxu0 0.0
        %296 = vmatpush1.msra.mxu0 0.0
        %297 = vmatprep.subr.mxu0 0.0
        %298 = vmatpush1.msra.mxu0 0.0
        %299 = vmatprep.subr.mxu0 0.0
        %300 = vmatpush1.msra.mxu0 0.0
        %301 = vmatprep.subr.mxu0 0.0
        %302 = vmatpush1.msra.mxu0 0.0
        %303 = vmatprep.subr.mxu0 0.0
        %304 = vmatpush1.msra.mxu0 0.0
        %305 = vmatprep.subr.mxu0 0.0
        %306 = vmatpush1.msra.mxu0 0.0
        %307 = vmatprep.subr.mxu0 0.0
        %308 = vmatpush1.msra.mxu0 0.0
        %309 = vmatprep.subr.mxu0 0.0
        %310 = vmatpush1.msra.mxu0 0.0
        %311 = vmatprep.subr.mxu0 0.0
        %312 = vmatpush1.msra.mxu0 0.0
        %313 = vmatprep.subr.mxu0 0.0
        %314 = vmatpush1.msra.mxu0 0.0
        %315 = vmatprep.subr.mxu0 0.0
        %316 = vmatpush1.msra.mxu0 0.0
        %317 = vmatprep.subr.mxu0 0.0
        %318 = vmatpush1.msra.mxu0 0.0
        %319 = vmatprep.subr.mxu0 0.0
        %320 = vmatpush1.msra.mxu0 0.0
        %321 = vmatprep.subr.mxu0 0.0
        %322 = vmatpush1.msra.mxu0 0.0
        %323 = vmatprep.subr.mxu0 0.0
        %324 = vmatpush1.msra.mxu0 0.0
        %325 = vmatprep.subr.mxu0 0.0
        %326 = vmatpush1.msra.mxu0 0.0
        %327 = vmatprep.subr.mxu0 0.0
        %328 = vmatpush1.msra.mxu0 0.0
        %329 = vmatprep.subr.mxu0 0.0
        %330 = vmatpush1.msra.mxu0 0.0
        %331 = vmatprep.subr.mxu0 0.0
        %332 = vmatpush1.msra.mxu0 0.0
        %333 = vmatprep.subr.mxu0 0.0
        %334 = vmatpush1.msra.mxu0 0.0
        %335 = vmatprep.subr.mxu0 0.0
        %336 = vmatpush1.msra.mxu0 0.0
        %337 = vmatprep.subr.mxu0 0.0
        %338 = vmatpush1.msra.mxu0 0.0
        %339 = vmatprep.subr.mxu0 0.0
        %340 = vmatpush1.msra.mxu0 0.0
        %341 = vmatprep.subr.mxu0 0.0
        %342 = vmatpush1.msra.mxu0 0.0
        %343 = vmatprep.subr.mxu0 0.0
        %344 = vmatpush1.msra.mxu0 0.0
        %345 = vmatprep.subr.mxu0 0.0
        %346 = vmatpush1.msra.mxu0 0.0
        %347 = vmatprep.subr.mxu0 0.0
        %348 = vmatpush1.msra.mxu0 0.0
        %349 = vmatprep.mubr.f32.mxu0 0.0
        %350 = vmatmul.mubr.f32.gmra.mrb[0].mxu0 %v283
        %v351 = vpop.f32.mrb[0].mxu0
        %v352 = vadd.f32 %v279, %v351
        %v353 = vpop.f32.mrb[0].mxu0
        %354 = vdwg.mxu0
        %v355 = vmul.f32 %v352, 0.35355338
        %v356 = vlaneseq
        %v357 = vshrl.u32 %v356, 7
        %v358 = vlaneseq
        %v359 = vand.u32 %v358, 127
        %vm360 = vcmp.gt.s32.totalorder %v359, %v357
        %362 = vrot.lane.b32.xlu0 %v352, 96
        %v363 = vpop.permute.xlu0 %362
        %vm364 = vcmask 64512
        %v366 = vsel %vm364, %v355, 0
        %v368 = vsel %vm364, %v363, 0
        %370 = vmatprep.subr.mxu0 0.0
        %371 = vmatpush1.xpose.msra.mxu0 %v368
        %372 = vmatprep.subr.mxu0 0.0
        %373 = vmatpush1.xpose.msra.mxu0 0.0
        %374 = vmatprep.subr.mxu0 0.0
        %375 = vmatpush1.xpose.msra.mxu0 0.0
        %376 = vmatprep.subr.mxu0 0.0
        %377 = vmatpush1.xpose.msra.mxu0 0.0
        %378 = vmatprep.subr.mxu0 0.0
        %379 = vmatpush1.xpose.msra.mxu0 0.0
        %380 = vmatprep.subr.mxu0 0.0
        %381 = vmatpush1.xpose.msra.mxu0 0.0
        %382 = vmatprep.subr.mxu0 0.0
        %383 = vmatpush1.xpose.msra.mxu0 0.0
        %384 = vmatprep.subr.mxu0 0.0
        %385 = vmatpush1.xpose.msra.mxu0 0.0
        %386 = vmatprep.subr.mxu0 0.0
        %387 = vmatpush1.xpose.msra.mxu0 0.0
        %388 = vmatprep.subr.mxu0 0.0
        %389 = vmatpush1.xpose.msra.mxu0 0.0
        %390 = vmatprep.subr.mxu0 0.0
        %391 = vmatpush1.xpose.msra.mxu0 0.0
        %392 = vmatprep.subr.mxu0 0.0
        %393 = vmatpush1.xpose.msra.mxu0 0.0
        %394 = vmatprep.subr.mxu0 0.0
        %395 = vmatpush1.xpose.msra.mxu0 0.0
        %396 = vmatprep.subr.mxu0 0.0
        %397 = vmatpush1.xpose.msra.mxu0 0.0
        %398 = vmatprep.subr.mxu0 0.0
        %399 = vmatpush1.xpose.msra.mxu0 0.0
        %400 = vmatprep.subr.mxu0 0.0
        %401 = vmatpush1.xpose.msra.mxu0 0.0
        %402 = vmatprep.subr.mxu0 0.0
        %403 = vmatpush1.xpose.msra.mxu0 0.0
        %404 = vmatprep.subr.mxu0 0.0
        %405 = vmatpush1.xpose.msra.mxu0 0.0
        %406 = vmatprep.subr.mxu0 0.0
        %407 = vmatpush1.xpose.msra.mxu0 0.0
        %408 = vmatprep.subr.mxu0 0.0
        %409 = vmatpush1.xpose.msra.mxu0 0.0
        %410 = vmatprep.subr.mxu0 0.0
        %411 = vmatpush1.xpose.msra.mxu0 0.0
        %412 = vmatprep.subr.mxu0 0.0
        %413 = vmatpush1.xpose.msra.mxu0 0.0
        %414 = vmatprep.subr.mxu0 0.0
        %415 = vmatpush1.xpose.msra.mxu0 0.0
        %416 = vmatprep.subr.mxu0 0.0
        %417 = vmatpush1.xpose.msra.mxu0 0.0
        %418 = vmatprep.subr.mxu0 0.0
        %419 = vmatpush1.xpose.msra.mxu0 0.0
        %420 = vmatprep.subr.mxu0 0.0
        %421 = vmatpush1.xpose.msra.mxu0 0.0
        %422 = vmatprep.subr.mxu0 0.0
        %423 = vmatpush1.xpose.msra.mxu0 0.0
        %424 = vmatprep.subr.mxu0 0.0
        %425 = vmatpush1.xpose.msra.mxu0 0.0
        %426 = vmatprep.subr.mxu0 0.0
        %427 = vmatpush1.xpose.msra.mxu0 0.0
        %428 = vmatprep.subr.mxu0 0.0
        %429 = vmatpush1.xpose.msra.mxu0 0.0
        %430 = vmatprep.subr.mxu0 0.0
        %431 = vmatpush1.xpose.msra.mxu0 0.0
        %432 = vmatprep.subr.mxu0 0.0
        %433 = vmatpush1.xpose.msra.mxu0 0.0
        %434 = vmatprep.mubr.f32.mxu0 0.0
        %435 = vmatmul.mubr.f32.gmra.mrb[0].mxu0 %v366
        %v436 = vpop.f32.mrb[0].mxu0
        %v437 = vadd.f32 0.0, %v436
        %v438 = vpop.f32.mrb[0].mxu0
        %439 = vdwg.mxu0
        %v440 = vsel %vm360, -1e+08, %v437
        %v441 = vsel %vm364, %v440, -inf
        %442 = vmax.xlane.f32.xlu0 %v441
        %v443 = vpop.xlane.xlu0 %442
        %v444 = vsub.f32 %v440, %v443
        %v445 = vmul.f32 %v444, 1.442695
        %v446 = vpow.pop %v445
        %v447 = vsel %vm364, %v446, 0.0
        %448 = vadd.xlane.f32.xlu0 %v447
        %v449 = vpop.xlane.xlu0 %448
        %v450 = vrcp.pop %v449
        %v451 = vmul.f32 %v446, %v450
        %452 = vrot.lane.b32.xlu0 %v352, 64
        %v453 = vpop.permute.xlu0 %452
        %v456 = vsel %vm364, %v451, 0
        %458 = vmatprep.subr.mxu0 0.0
        %459 = vmatpush1.msra.mxu0 %v453
        %460 = vmatprep.subr.mxu0 0.0
        %461 = vmatpush1.msra.mxu0 0.0
        %462 = vmatprep.subr.mxu0 0.0
        %463 = vmatpush1.msra.mxu0 0.0
        %464 = vmatprep.subr.mxu0 0.0
        %465 = vmatpush1.msra.mxu0 0.0
        %466 = vmatprep.subr.mxu0 0.0
        %467 = vmatpush1.msra.mxu0 0.0
        %468 = vmatprep.subr.mxu0 0.0
        %469 = vmatpush1.msra.mxu0 0.0
        %470 = vmatprep.subr.mxu0 0.0
        %471 = vmatpush1.msra.mxu0 0.0
        %472 = vmatprep.subr.mxu0 0.0
        %473 = vmatpush1.msra.mxu0 0.0
        %474 = vmatprep.subr.mxu0 0.0
        %475 = vmatpush1.msra.mxu0 0.0
        %476 = vmatprep.subr.mxu0 0.0
        %477 = vmatpush1.msra.mxu0 0.0
        %478 = vmatprep.subr.mxu0 0.0
        %479 = vmatpush1.msra.mxu0 0.0
        %480 = vmatprep.subr.mxu0 0.0
        %481 = vmatpush1.msra.mxu0 0.0
        %482 = vmatprep.subr.mxu0 0.0
        %483 = vmatpush1.msra.mxu0 0.0
        %484 = vmatprep.subr.mxu0 0.0
        %485 = vmatpush1.msra.mxu0 0.0
        %486 = vmatprep.subr.mxu0 0.0
        %487 = vmatpush1.msra.mxu0 0.0
        %488 = vmatprep.subr.mxu0 0.0
        %489 = vmatpush1.msra.mxu0 0.0
        %490 = vmatprep.subr.mxu0 0.0
        %491 = vmatpush1.msra.mxu0 0.0
        %492 = vmatprep.subr.mxu0 0.0
        %493 = vmatpush1.msra.mxu0 0.0
        %494 = vmatprep.subr.mxu0 0.0
        %495 = vmatpush1.msra.mxu0 0.0
        %496 = vmatprep.subr.mxu0 0.0
        %497 = vmatpush1.msra.mxu0 0.0
        %498 = vmatprep.subr.mxu0 0.0
        %499 = vmatpush1.msra.mxu0 0.0
        %500 = vmatprep.subr.mxu0 0.0
        %501 = vmatpush1.msra.mxu0 0.0
        %502 = vmatprep.subr.mxu0 0.0
        %503 = vmatpush1.msra.mxu0 0.0
        %504 = vmatprep.subr.mxu0 0.0
        %505 = vmatpush1.msra.mxu0 0.0
        %506 = vmatprep.subr.mxu0 0.0
        %507 = vmatpush1.msra.mxu0 0.0
        %508 = vmatprep.subr.mxu0 0.0
        %509 = vmatpush1.msra.mxu0 0.0
        %510 = vmatprep.subr.mxu0 0.0
        %511 = vmatpush1.msra.mxu0 0.0
        %512 = vmatprep.subr.mxu0 0.0
        %513 = vmatpush1.msra.mxu0 0.0
        %514 = vmatprep.subr.mxu0 0.0
        %515 = vmatpush1.msra.mxu0 0.0
        %516 = vmatprep.subr.mxu0 0.0
        %517 = vmatpush1.msra.mxu0 0.0
        %518 = vmatprep.subr.mxu0 0.0
        %519 = vmatpush1.msra.mxu0 0.0
        %520 = vmatprep.subr.mxu0 0.0
        %521 = vmatpush1.msra.mxu0 0.0
        %522 = vmatprep.mubr.f32.mxu0 0.0
        %523 = vmatmul.mubr.f32.gmra.mrb[0].mxu0 %v456
        %v524 = vpop.f32.mrb[0].mxu0
        %v525 = vadd.f32 0.0, %v524
        %v526 = vpop.f32.mrb[0].mxu0
        %527 = vdwg.mxu0
        %528 = vrot.lane.b32.xlu0 %v355, 120
        %v529 = vpop.permute.xlu0 %528
        %530 = vrot.lane.b32.xlu0 %v352, 88
        %v531 = vpop.permute.xlu0 %530
        %v532 = vsel %vm364, %v529, 0
        %v534 = vsel %vm364, %v531, 0
        %536 = vmatprep.subr.mxu0 0.0
        %537 = vmatpush1.xpose.msra.mxu0 %v534
        %538 = vmatprep.subr.mxu0 0.0
        %539 = vmatpush1.xpose.msra.mxu0 0.0
        %540 = vmatprep.subr.mxu0 0.0
        %541 = vmatpush1.xpose.msra.mxu0 0.0
        %542 = vmatprep.subr.mxu0 0.0
        %543 = vmatpush1.xpose.msra.mxu0 0.0
        %544 = vmatprep.subr.mxu0 0.0
        %545 = vmatpush1.xpose.msra.mxu0 0.0
        %546 = vmatprep.subr.mxu0 0.0
        %547 = vmatpush1.xpose.msra.mxu0 0.0
        %548 = vmatprep.subr.mxu0 0.0
        %549 = vmatpush1.xpose.msra.mxu0 0.0
        %550 = vmatprep.subr.mxu0 0.0
        %551 = vmatpush1.xpose.msra.mxu0 0.0
        %552 = vmatprep.subr.mxu0 0.0
        %553 = vmatpush1.xpose.msra.mxu0 0.0
        %554 = vmatprep.subr.mxu0 0.0
        %555 = vmatpush1.xpose.msra.mxu0 0.0
        %556 = vmatprep.subr.mxu0 0.0
        %557 = vmatpush1.xpose.msra.mxu0 0.0
        %558 = vmatprep.subr.mxu0 0.0
        %559 = vmatpush1.xpose.msra.mxu0 0.0
        %560 = vmatprep.subr.mxu0 0.0
        %561 = vmatpush1.xpose.msra.mxu0 0.0
        %562 = vmatprep.subr.mxu0 0.0
        %563 = vmatpush1.xpose.msra.mxu0 0.0
        %564 = vmatprep.subr.mxu0 0.0
        %565 = vmatpush1.xpose.msra.mxu0 0.0
        %566 = vmatprep.subr.mxu0 0.0
        %567 = vmatpush1.xpose.msra.mxu0 0.0
        %568 = vmatprep.subr.mxu0 0.0
        %569 = vmatpush1.xpose.msra.mxu0 0.0
        %570 = vmatprep.subr.mxu0 0.0
        %571 = vmatpush1.xpose.msra.mxu0 0.0
        %572 = vmatprep.subr.mxu0 0.0
        %573 = vmatpush1.xpose.msra.mxu0 0.0
        %574 = vmatprep.subr.mxu0 0.0
        %575 = vmatpush1.xpose.msra.mxu0 0.0
        %576 = vmatprep.subr.mxu0 0.0
        %577 = vmatpush1.xpose.msra.mxu0 0.0
        %578 = vmatprep.subr.mxu0 0.0
        %579 = vmatpush1.xpose.msra.mxu0 0.0
        %580 = vmatprep.subr.mxu0 0.0
        %581 = vmatpush1.xpose.msra.mxu0 0.0
        %582 = vmatprep.subr.mxu0 0.0
        %583 = vmatpush1.xpose.msra.mxu0 0.0
        %584 = vmatprep.subr.mxu0 0.0
        %585 = vmatpush1.xpose.msra.mxu0 0.0
        %586 = vmatprep.subr.mxu0 0.0
        %587 = vmatpush1.xpose.msra.mxu0 0.0
        %588 = vmatprep.subr.mxu0 0.0
        %589 = vmatpush1.xpose.msra.mxu0 0.0
        %590 = vmatprep.subr.mxu0 0.0
        %591 = vmatpush1.xpose.msra.mxu0 0.0
        %592 = vmatprep.subr.mxu0 0.0
        %593 = vmatpush1.xpose.msra.mxu0 0.0
        %594 = vmatprep.subr.mxu0 0.0
        %595 = vmatpush1.xpose.msra.mxu0 0.0
        %596 = vmatprep.subr.mxu0 0.0
        %597 = vmatpush1.xpose.msra.mxu0 0.0
        %598 = vmatprep.subr.mxu0 0.0
        %599 = vmatpush1.xpose.msra.mxu0 0.0
        %600 = vmatprep.mubr.f32.mxu0 0.0
        %601 = vmatmul.mubr.f32.gmra.mrb[0].mxu0 %v532
        %v602 = vpop.f32.mrb[0].mxu0
        %v603 = vadd.f32 0.0, %v602
        %v604 = vpop.f32.mrb[0].mxu0
        %605 = vdwg.mxu0
        %v606 = vsel %vm360, -1e+08, %v603
        %v607 = vsel %vm364, %v606, -inf
        %608 = vmax.xlane.f32.xlu0 %v607
        %v609 = vpop.xlane.xlu0 %608
        %v610 = vsub.f32 %v606, %v609
        %v611 = vmul.f32 %v610, 1.442695
        %v612 = vpow.pop %v611
        %v613 = vsel %vm364, %v612, 0.0
        %614 = vadd.xlane.f32.xlu0 %v613
        %v615 = vpop.xlane.xlu0 %614
        %v616 = vrcp.pop %v615
        %v617 = vmul.f32 %v612, %v616
        %618 = vrot.lane.b32.xlu0 %v352, 56
        %v619 = vpop.permute.xlu0 %618
        %v622 = vsel %vm364, %v617, 0
        %624 = vmatprep.subr.mxu0 0.0
        %625 = vmatpush1.msra.mxu0 %v619
        %626 = vmatprep.subr.mxu0 0.0
        %627 = vmatpush1.msra.mxu0 0.0
        %628 = vmatprep.subr.mxu0 0.0
        %629 = vmatpush1.msra.mxu0 0.0
        %630 = vmatprep.subr.mxu0 0.0
        %631 = vmatpush1.msra.mxu0 0.0
        %632 = vmatprep.subr.mxu0 0.0
        %633 = vmatpush1.msra.mxu0 0.0
        %634 = vmatprep.subr.mxu0 0.0
        %635 = vmatpush1.msra.mxu0 0.0
        %636 = vmatprep.subr.mxu0 0.0
        %637 = vmatpush1.msra.mxu0 0.0
        %638 = vmatprep.subr.mxu0 0.0
        %639 = vmatpush1.msra.mxu0 0.0
        %640 = vmatprep.subr.mxu0 0.0
        %641 = vmatpush1.msra.mxu0 0.0
        %642 = vmatprep.subr.mxu0 0.0
        %643 = vmatpush1.msra.mxu0 0.0
        %644 = vmatprep.subr.mxu0 0.0
        %645 = vmatpush1.msra.mxu0 0.0
        %646 = vmatprep.subr.mxu0 0.0
        %647 = vmatpush1.msra.mxu0 0.0
        %648 = vmatprep.subr.mxu0 0.0
        %649 = vmatpush1.msra.mxu0 0.0
        %650 = vmatprep.subr.mxu0 0.0
        %651 = vmatpush1.msra.mxu0 0.0
        %652 = vmatprep.subr.mxu0 0.0
        %653 = vmatpush1.msra.mxu0 0.0
        %654 = vmatprep.subr.mxu0 0.0
        %655 = vmatpush1.msra.mxu0 0.0
        %656 = vmatprep.subr.mxu0 0.0
        %657 = vmatpush1.msra.mxu0 0.0
        %658 = vmatprep.subr.mxu0 0.0
        %659 = vmatpush1.msra.mxu0 0.0
        %660 = vmatprep.subr.mxu0 0.0
        %661 = vmatpush1.msra.mxu0 0.0
        %662 = vmatprep.subr.mxu0 0.0
        %663 = vmatpush1.msra.mxu0 0.0
        %664 = vmatprep.subr.mxu0 0.0
        %665 = vmatpush1.msra.mxu0 0.0
        %666 = vmatprep.subr.mxu0 0.0
        %667 = vmatpush1.msra.mxu0 0.0
        %668 = vmatprep.subr.mxu0 0.0
        %669 = vmatpush1.msra.mxu0 0.0
        %670 = vmatprep.subr.mxu0 0.0
        %671 = vmatpush1.msra.mxu0 0.0
        %672 = vmatprep.subr.mxu0 0.0
        %673 = vmatpush1.msra.mxu0 0.0
        %674 = vmatprep.subr.mxu0 0.0
        %675 = vmatpush1.msra.mxu0 0.0
        %676 = vmatprep.subr.mxu0 0.0
        %677 = vmatpush1.msra.mxu0 0.0
        %678 = vmatprep.subr.mxu0 0.0
        %679 = vmatpush1.msra.mxu0 0.0
        %680 = vmatprep.subr.mxu0 0.0
        %681 = vmatpush1.msra.mxu0 0.0
        %682 = vmatprep.subr.mxu0 0.0
        %683 = vmatpush1.msra.mxu0 0.0
        %684 = vmatprep.subr.mxu0 0.0
        %685 = vmatpush1.msra.mxu0 0.0
        %686 = vmatprep.subr.mxu0 0.0
        %687 = vmatpush1.msra.mxu0 0.0
        %688 = vmatprep.mubr.f32.mxu0 0.0
        %689 = vmatmul.mubr.f32.gmra.mrb[0].mxu0 %v622
        %v690 = vpop.f32.mrb[0].mxu0
        %v691 = vadd.f32 0.0, %v690
        %v692 = vpop.f32.mrb[0].mxu0
        %693 = vdwg.mxu0
        %694 = vrot.lane.b32.xlu0 %v355, 112
        %v695 = vpop.permute.xlu0 %694
        %696 = vrot.lane.b32.xlu0 %v352, 80
        %v697 = vpop.permute.xlu0 %696
        %v698 = vsel %vm364, %v695, 0
        %v700 = vsel %vm364, %v697, 0
        %702 = vmatprep.subr.mxu0 0.0
        %703 = vmatpush1.xpose.msra.mxu0 %v700
        %704 = vmatprep.subr.mxu0 0.0
        %705 = vmatpush1.xpose.msra.mxu0 0.0
        %706 = vmatprep.subr.mxu0 0.0
        %707 = vmatpush1.xpose.msra.mxu0 0.0
        %708 = vmatprep.subr.mxu0 0.0
        %709 = vmatpush1.xpose.msra.mxu0 0.0
        %710 = vmatprep.subr.mxu0 0.0
        %711 = vmatpush1.xpose.msra.mxu0 0.0
        %712 = vmatprep.subr.mxu0 0.0
        %713 = vmatpush1.xpose.msra.mxu0 0.0
        %714 = vmatprep.subr.mxu0 0.0
        %715 = vmatpush1.xpose.msra.mxu0 0.0
        %716 = vmatprep.subr.mxu0 0.0
        %717 = vmatpush1.xpose.msra.mxu0 0.0
        %718 = vmatprep.subr.mxu0 0.0
        %719 = vmatpush1.xpose.msra.mxu0 0.0
        %720 = vmatprep.subr.mxu0 0.0
        %721 = vmatpush1.xpose.msra.mxu0 0.0
        %722 = vmatprep.subr.mxu0 0.0
        %723 = vmatpush1.xpose.msra.mxu0 0.0
        %724 = vmatprep.subr.mxu0 0.0
        %725 = vmatpush1.xpose.msra.mxu0 0.0
        %726 = vmatprep.subr.mxu0 0.0
        %727 = vmatpush1.xpose.msra.mxu0 0.0
        %728 = vmatprep.subr.mxu0 0.0
        %729 = vmatpush1.xpose.msra.mxu0 0.0
        %730 = vmatprep.subr.mxu0 0.0
        %731 = vmatpush1.xpose.msra.mxu0 0.0
        %732 = vmatprep.subr.mxu0 0.0
        %733 = vmatpush1.xpose.msra.mxu0 0.0
        %734 = vmatprep.subr.mxu0 0.0
        %735 = vmatpush1.xpose.msra.mxu0 0.0
        %736 = vmatprep.subr.mxu0 0.0
        %737 = vmatpush1.xpose.msra.mxu0 0.0
        %738 = vmatprep.subr.mxu0 0.0
        %739 = vmatpush1.xpose.msra.mxu0 0.0
        %740 = vmatprep.subr.mxu0 0.0
        %741 = vmatpush1.xpose.msra.mxu0 0.0
        %742 = vmatprep.subr.mxu0 0.0
        %743 = vmatpush1.xpose.msra.mxu0 0.0
        %744 = vmatprep.subr.mxu0 0.0
        %745 = vmatpush1.xpose.msra.mxu0 0.0
        %746 = vmatprep.subr.mxu0 0.0
        %747 = vmatpush1.xpose.msra.mxu0 0.0
        %748 = vmatprep.subr.mxu0 0.0
        %749 = vmatpush1.xpose.msra.mxu0 0.0
        %750 = vmatprep.subr.mxu0 0.0
        %751 = vmatpush1.xpose.msra.mxu0 0.0
        %752 = vmatprep.subr.mxu0 0.0
        %753 = vmatpush1.xpose.msra.mxu0 0.0
        %754 = vmatprep.subr.mxu0 0.0
        %755 = vmatpush1.xpose.msra.mxu0 0.0
        %756 = vmatprep.subr.mxu0 0.0
        %757 = vmatpush1.xpose.msra.mxu0 0.0
        %758 = vmatprep.subr.mxu0 0.0
        %759 = vmatpush1.xpose.msra.mxu0 0.0
        %760 = vmatprep.subr.mxu0 0.0
        %761 = vmatpush1.xpose.msra.mxu0 0.0
        %762 = vmatprep.subr.mxu0 0.0
        %763 = vmatpush1.xpose.msra.mxu0 0.0
        %764 = vmatprep.subr.mxu0 0.0
        %765 = vmatpush1.xpose.msra.mxu0 0.0
        %766 = vmatprep.mubr.f32.mxu0 0.0
        %767 = vmatmul.mubr.f32.gmra.mrb[0].mxu0 %v698
        %v768 = vpop.f32.mrb[0].mxu0
        %v769 = vadd.f32 0.0, %v768
        %v770 = vpop.f32.mrb[0].mxu0
        %771 = vdwg.mxu0
        %v772 = vsel %vm360, -1e+08, %v769
        %v773 = vsel %vm364, %v772, -inf
        %774 = vmax.xlane.f32.xlu0 %v773
        %v775 = vpop.xlane.xlu0 %774
        %v776 = vsub.f32 %v772, %v775
        %v777 = vmul.f32 %v776, 1.442695
        %v778 = vpow.pop %v777
        %v779 = vsel %vm364, %v778, 0.0
        %780 = vadd.xlane.f32.xlu0 %v779
        %v781 = vpop.xlane.xlu0 %780
        %v782 = vrcp.pop %v781
        %v783 = vmul.f32 %v778, %v782
        %784 = vrot.lane.b32.xlu0 %v352, 48
        %v785 = vpop.permute.xlu0 %784
        %v788 = vsel %vm364, %v783, 0
        %790 = vmatprep.subr.mxu0 0.0
        %791 = vmatpush1.msra.mxu0 %v785
        %792 = vmatprep.subr.mxu0 0.0
        %793 = vmatpush1.msra.mxu0 0.0
        %794 = vmatprep.subr.mxu0 0.0
        %795 = vmatpush1.msra.mxu0 0.0
        %796 = vmatprep.subr.mxu0 0.0
        %797 = vmatpush1.msra.mxu0 0.0
        %798 = vmatprep.subr.mxu0 0.0
        %799 = vmatpush1.msra.mxu0 0.0
        %800 = vmatprep.subr.mxu0 0.0
        %801 = vmatpush1.msra.mxu0 0.0
        %802 = vmatprep.subr.mxu0 0.0
        %803 = vmatpush1.msra.mxu0 0.0
        %804 = vmatprep.subr.mxu0 0.0
        %805 = vmatpush1.msra.mxu0 0.0
        %806 = vmatprep.subr.mxu0 0.0
        %807 = vmatpush1.msra.mxu0 0.0
        %808 = vmatprep.subr.mxu0 0.0
        %809 = vmatpush1.msra.mxu0 0.0
        %810 = vmatprep.subr.mxu0 0.0
        %811 = vmatpush1.msra.mxu0 0.0
        %812 = vmatprep.subr.mxu0 0.0
        %813 = vmatpush1.msra.mxu0 0.0
        %814 = vmatprep.subr.mxu0 0.0
        %815 = vmatpush1.msra.mxu0 0.0
        %816 = vmatprep.subr.mxu0 0.0
        %817 = vmatpush1.msra.mxu0 0.0
        %818 = vmatprep.subr.mxu0 0.0
        %819 = vmatpush1.msra.mxu0 0.0
        %820 = vmatprep.subr.mxu0 0.0
        %821 = vmatpush1.msra.mxu0 0.0
        %822 = vmatprep.subr.mxu0 0.0
        %823 = vmatpush1.msra.mxu0 0.0
        %824 = vmatprep.subr.mxu0 0.0
        %825 = vmatpush1.msra.mxu0 0.0
        %826 = vmatprep.subr.mxu0 0.0
        %827 = vmatpush1.msra.mxu0 0.0
        %828 = vmatprep.subr.mxu0 0.0
        %829 = vmatpush1.msra.mxu0 0.0
        %830 = vmatprep.subr.mxu0 0.0
        %831 = vmatpush1.msra.mxu0 0.0
        %832 = vmatprep.subr.mxu0 0.0
        %833 = vmatpush1.msra.mxu0 0.0
        %834 = vmatprep.subr.mxu0 0.0
        %835 = vmatpush1.msra.mxu0 0.0
        %836 = vmatprep.subr.mxu0 0.0
        %837 = vmatpush1.msra.mxu0 0.0
        %838 = vmatprep.subr.mxu0 0.0
        %839 = vmatpush1.msra.mxu0 0.0
        %840 = vmatprep.subr.mxu0 0.0
        %841 = vmatpush1.msra.mxu0 0.0
        %842 = vmatprep.subr.mxu0 0.0
        %843 = vmatpush1.msra.mxu0 0.0
        %844 = vmatprep.subr.mxu0 0.0
        %845 = vmatpush1.msra.mxu0 0.0
        %846 = vmatprep.subr.mxu0 0.0
        %847 = vmatpush1.msra.mxu0 0.0
        %848 = vmatprep.subr.mxu0 0.0
        %849 = vmatpush1.msra.mxu0 0.0
        %850 = vmatprep.subr.mxu0 0.0
        %851 = vmatpush1.msra.mxu0 0.0
        %852 = vmatprep.subr.mxu0 0.0
        %853 = vmatpush1.msra.mxu0 0.0
        %854 = vmatprep.mubr.f32.mxu0 0.0
        %855 = vmatmul.mubr.f32.gmra.mrb[0].mxu0 %v788
        %v856 = vpop.f32.mrb[0].mxu0
        %v857 = vadd.f32 0.0, %v856
        %v858 = vpop.f32.mrb[0].mxu0
        %859 = vdwg.mxu0
        %860 = vrot.lane.b32.xlu0 %v355, 104
        %v861 = vpop.permute.xlu0 %860
        %862 = vrot.lane.b32.xlu0 %v352, 72
        %v863 = vpop.permute.xlu0 %862
        %v864 = vsel %vm364, %v861, 0
        %v866 = vsel %vm364, %v863, 0
        %868 = vmatprep.subr.mxu0 0.0
        %869 = vmatpush1.xpose.msra.mxu0 %v866
        %870 = vmatprep.subr.mxu0 0.0
        %871 = vmatpush1.xpose.msra.mxu0 0.0
        %872 = vmatprep.subr.mxu0 0.0
        %873 = vmatpush1.xpose.msra.mxu0 0.0
        %874 = vmatprep.subr.mxu0 0.0
        %875 = vmatpush1.xpose.msra.mxu0 0.0
        %876 = vmatprep.subr.mxu0 0.0
        %877 = vmatpush1.xpose.msra.mxu0 0.0
        %878 = vmatprep.subr.mxu0 0.0
        %879 = vmatpush1.xpose.msra.mxu0 0.0
        %880 = vmatprep.subr.mxu0 0.0
        %881 = vmatpush1.xpose.msra.mxu0 0.0
        %882 = vmatprep.subr.mxu0 0.0
        %883 = vmatpush1.xpose.msra.mxu0 0.0
        %884 = vmatprep.subr.mxu0 0.0
        %885 = vmatpush1.xpose.msra.mxu0 0.0
        %886 = vmatprep.subr.mxu0 0.0
        %887 = vmatpush1.xpose.msra.mxu0 0.0
        %888 = vmatprep.subr.mxu0 0.0
        %889 = vmatpush1.xpose.msra.mxu0 0.0
        %890 = vmatprep.subr.mxu0 0.0
        %891 = vmatpush1.xpose.msra.mxu0 0.0
        %892 = vmatprep.subr.mxu0 0.0
        %893 = vmatpush1.xpose.msra.mxu0 0.0
        %894 = vmatprep.subr.mxu0 0.0
        %895 = vmatpush1.xpose.msra.mxu0 0.0
        %896 = vmatprep.subr.mxu0 0.0
        %897 = vmatpush1.xpose.msra.mxu0 0.0
        %898 = vmatprep.subr.mxu0 0.0
        %899 = vmatpush1.xpose.msra.mxu0 0.0
        %900 = vmatprep.subr.mxu0 0.0
        %901 = vmatpush1.xpose.msra.mxu0 0.0
        %902 = vmatprep.subr.mxu0 0.0
        %903 = vmatpush1.xpose.msra.mxu0 0.0
        %904 = vmatprep.subr.mxu0 0.0
        %905 = vmatpush1.xpose.msra.mxu0 0.0
        %906 = vmatprep.subr.mxu0 0.0
        %907 = vmatpush1.xpose.msra.mxu0 0.0
        %908 = vmatprep.subr.mxu0 0.0
        %909 = vmatpush1.xpose.msra.mxu0 0.0
        %910 = vmatprep.subr.mxu0 0.0
        %911 = vmatpush1.xpose.msra.mxu0 0.0
        %912 = vmatprep.subr.mxu0 0.0
        %913 = vmatpush1.xpose.msra.mxu0 0.0
        %914 = vmatprep.subr.mxu0 0.0
        %915 = vmatpush1.xpose.msra.mxu0 0.0
        %916 = vmatprep.subr.mxu0 0.0
        %917 = vmatpush1.xpose.msra.mxu0 0.0
        %918 = vmatprep.subr.mxu0 0.0
        %919 = vmatpush1.xpose.msra.mxu0 0.0
        %920 = vmatprep.subr.mxu0 0.0
        %921 = vmatpush1.xpose.msra.mxu0 0.0
        %922 = vmatprep.subr.mxu0 0.0
        %923 = vmatpush1.xpose.msra.mxu0 0.0
        %924 = vmatprep.subr.mxu0 0.0
        %925 = vmatpush1.xpose.msra.mxu0 0.0
        %926 = vmatprep.subr.mxu0 0.0
        %927 = vmatpush1.xpose.msra.mxu0 0.0
        %928 = vmatprep.subr.mxu0 0.0
        %929 = vmatpush1.xpose.msra.mxu0 0.0
        %930 = vmatprep.subr.mxu0 0.0
        %931 = vmatpush1.xpose.msra.mxu0 0.0
        %932 = vmatprep.mubr.f32.mxu0 0.0
        %933 = vmatmul.mubr.f32.gmra.mrb[0].mxu0 %v864
        %v934 = vpop.f32.mrb[0].mxu0
        %v935 = vadd.f32 0.0, %v934
        %v936 = vpop.f32.mrb[0].mxu0
        %937 = vdwg.mxu0
        %v938 = vsel %vm360, -1e+08, %v935
        %v939 = vsel %vm364, %v938, -inf
        %940 = vmax.xlane.f32.xlu0 %v939
        %v941 = vpop.xlane.xlu0 %940
        %v942 = vsub.f32 %v938, %v941
        %v943 = vmul.f32 %v942, 1.442695
        %v944 = vpow.pop %v943
        %v945 = vsel %vm364, %v944, 0.0
        %946 = vadd.xlane.f32.xlu0 %v945
        %v947 = vpop.xlane.xlu0 %946
        %v948 = vrcp.pop %v947
        %v949 = vmul.f32 %v944, %v948
        %950 = vrot.lane.b32.xlu0 %v352, 40
        %v951 = vpop.permute.xlu0 %950
        %v954 = vsel %vm364, %v949, 0
        %956 = vmatprep.subr.mxu0 0.0
        %957 = vmatpush1.msra.mxu0 %v951
        %958 = vmatprep.subr.mxu0 0.0
        %959 = vmatpush1.msra.mxu0 0.0
        %960 = vmatprep.subr.mxu0 0.0
        %961 = vmatpush1.msra.mxu0 0.0
        %962 = vmatprep.subr.mxu0 0.0
        %963 = vmatpush1.msra.mxu0 0.0
        %964 = vmatprep.subr.mxu0 0.0
        %965 = vmatpush1.msra.mxu0 0.0
        %966 = vmatprep.subr.mxu0 0.0
        %967 = vmatpush1.msra.mxu0 0.0
        %968 = vmatprep.subr.mxu0 0.0
        %969 = vmatpush1.msra.mxu0 0.0
        %970 = vmatprep.subr.mxu0 0.0
        %971 = vmatpush1.msra.mxu0 0.0
        %972 = vmatprep.subr.mxu0 0.0
        %973 = vmatpush1.msra.mxu0 0.0
        %974 = vmatprep.subr.mxu0 0.0
        %975 = vmatpush1.msra.mxu0 0.0
        %976 = vmatprep.subr.mxu0 0.0
        %977 = vmatpush1.msra.mxu0 0.0
        %978 = vmatprep.subr.mxu0 0.0
        %979 = vmatpush1.msra.mxu0 0.0
        %980 = vmatprep.subr.mxu0 0.0
        %981 = vmatpush1.msra.mxu0 0.0
        %982 = vmatprep.subr.mxu0 0.0
        %983 = vmatpush1.msra.mxu0 0.0
        %984 = vmatprep.subr.mxu0 0.0
        %985 = vmatpush1.msra.mxu0 0.0
        %986 = vmatprep.subr.mxu0 0.0
        %987 = vmatpush1.msra.mxu0 0.0
        %988 = vmatprep.subr.mxu0 0.0
        %989 = vmatpush1.msra.mxu0 0.0
        %990 = vmatprep.subr.mxu0 0.0
        %991 = vmatpush1.msra.mxu0 0.0
        %992 = vmatprep.subr.mxu0 0.0
        %993 = vmatpush1.msra.mxu0 0.0
        %994 = vmatprep.subr.mxu0 0.0
        %995 = vmatpush1.msra.mxu0 0.0
        %996 = vmatprep.subr.mxu0 0.0
        %997 = vmatpush1.msra.mxu0 0.0
        %998 = vmatprep.subr.mxu0 0.0
        %999 = vmatpush1.msra.mxu0 0.0
        %1000 = vmatprep.subr.mxu0 0.0
        %1001 = vmatpush1.msra.mxu0 0.0
        %1002 = vmatprep.subr.mxu0 0.0
        %1003 = vmatpush1.msra.mxu0 0.0
        %1004 = vmatprep.subr.mxu0 0.0
        %1005 = vmatpush1.msra.mxu0 0.0
        %1006 = vmatprep.subr.mxu0 0.0
        %1007 = vmatpush1.msra.mxu0 0.0
        %1008 = vmatprep.subr.mxu0 0.0
        %1009 = vmatpush1.msra.mxu0 0.0
        %1010 = vmatprep.subr.mxu0 0.0
        %1011 = vmatpush1.msra.mxu0 0.0
        %1012 = vmatprep.subr.mxu0 0.0
        %1013 = vmatpush1.msra.mxu0 0.0
        %1014 = vmatprep.subr.mxu0 0.0
        %1015 = vmatpush1.msra.mxu0 0.0
        %1016 = vmatprep.subr.mxu0 0.0
        %1017 = vmatpush1.msra.mxu0 0.0
        %1018 = vmatprep.subr.mxu0 0.0
        %1019 = vmatpush1.msra.mxu0 0.0
        %1020 = vmatprep.mubr.f32.mxu0 0.0
        %1021 = vmatmul.mubr.f32.gmra.mrb[0].mxu0 %v954
        %v1022 = vpop.f32.mrb[0].mxu0
        %v1023 = vadd.f32 0.0, %v1022
        %v1024 = vpop.f32.mrb[0].mxu0
        %1025 = vdwg.mxu0
        %1027 = vrot.lane.b32.xlu0 %v691, 8
        %v1028 = vpop.permute.xlu0 %1027
        %1031 = vrot.lane.b32.xlu0 %v857, 16
        %v1032 = vpop.permute.xlu0 %1031
        %1035 = vrot.lane.b32.xlu0 %v1023, 24
        %v1036 = vpop.permute.xlu0 %1035
        %v1038 = vsel %vm364, %v525, %v1028
        %vm1039 = vcmask 130048
        %v1040 = vsel %vm1039, %v1038, %v1032
        %vm1041 = vcmask 195584
        %v1042 = vsel %vm1041, %v1040, %v1036
        %v1043 = vld [vmem:[#allocation7] sm:$0xff]
        %v1044 = vld [vmem:[#allocation7 + $0x8] sm:$0xff]
        %v1045 = vld [vmem:[#allocation7 + $0x10] sm:$0xff]
        %v1046 = vld [vmem:[#allocation7 + $0x18] sm:$0xff]
        %v1047 = vld [vmem:[%s4] sm:$0x1]
        %v1049 = vlaneseq
        %v1050 = vshrl.u32 %v1049, 7
        %v1051 = vsub.s32 0, %v1050
        %v1052 = vrot.slane %v1047, %v1051
        %v1055 = vsel %vm281, %v1042, 0
        %1057 = vmatprep.subr.mxu0 0.0
        %1058 = vmatpush1.msra.mxu0 %v1043
        %1059 = vmatprep.subr.mxu0 0.0
        %1060 = vmatpush1.msra.mxu0 %v1044
        %1061 = vmatprep.subr.mxu0 0.0
        %1062 = vmatpush1.msra.mxu0 %v1045
        %1063 = vmatprep.subr.mxu0 0.0
        %1064 = vmatpush1.msra.mxu0 %v1046
        %1065 = vmatprep.subr.mxu0 0.0
        %1066 = vmatpush1.msra.mxu0 0.0
        %1067 = vmatprep.subr.mxu0 0.0
        %1068 = vmatpush1.msra.mxu0 0.0
        %1069 = vmatprep.subr.mxu0 0.0
        %1070 = vmatpush1.msra.mxu0 0.0
        %1071 = vmatprep.subr.mxu0 0.0
        %1072 = vmatpush1.msra.mxu0 0.0
        %1073 = vmatprep.subr.mxu0 0.0
        %1074 = vmatpush1.msra.mxu0 0.0
        %1075 = vmatprep.subr.mxu0 0.0
        %1076 = vmatpush1.msra.mxu0 0.0
        %1077 = vmatprep.subr.mxu0 0.0
        %1078 = vmatpush1.msra.mxu0 0.0
        %1079 = vmatprep.subr.mxu0 0.0
        %1080 = vmatpush1.msra.mxu0 0.0
        %1081 = vmatprep.subr.mxu0 0.0
        %1082 = vmatpush1.msra.mxu0 0.0
        %1083 = vmatprep.subr.mxu0 0.0
        %1084 = vmatpush1.msra.mxu0 0.0
        %1085 = vmatprep.subr.mxu0 0.0
        %1086 = vmatpush1.msra.mxu0 0.0
        %1087 = vmatprep.subr.mxu0 0.0
        %1088 = vmatpush1.msra.mxu0 0.0
        %1089 = vmatprep.subr.mxu0 0.0
        %1090 = vmatpush1.msra.mxu0 0.0
        %1091 = vmatprep.subr.mxu0 0.0
        %1092 = vmatpush1.msra.mxu0 0.0
        %1093 = vmatprep.subr.mxu0 0.0
        %1094 = vmatpush1.msra.mxu0 0.0
        %1095 = vmatprep.subr.mxu0 0.0
        %1096 = vmatpush1.msra.mxu0 0.0
        %1097 = vmatprep.subr.mxu0 0.0
        %1098 = vmatpush1.msra.mxu0 0.0
        %1099 = vmatprep.subr.mxu0 0.0
        %1100 = vmatpush1.msra.mxu0 0.0
        %1101 = vmatprep.subr.mxu0 0.0
        %1102 = vmatpush1.msra.mxu0 0.0
        %1103 = vmatprep.subr.mxu0 0.0
        %1104 = vmatpush1.msra.mxu0 0.0
        %1105 = vmatprep.subr.mxu0 0.0
        %1106 = vmatpush1.msra.mxu0 0.0
        %1107 = vmatprep.subr.mxu0 0.0
        %1108 = vmatpush1.msra.mxu0 0.0
        %1109 = vmatprep.subr.mxu0 0.0
        %1110 = vmatpush1.msra.mxu0 0.0
        %1111 = vmatprep.subr.mxu0 0.0
        %1112 = vmatpush1.msra.mxu0 0.0
        %1113 = vmatprep.subr.mxu0 0.0
        %1114 = vmatpush1.msra.mxu0 0.0
        %1115 = vmatprep.subr.mxu0 0.0
        %1116 = vmatpush1.msra.mxu0 0.0
        %1117 = vmatprep.subr.mxu0 0.0
        %1118 = vmatpush1.msra.mxu0 0.0
        %1119 = vmatprep.subr.mxu0 0.0
        %1120 = vmatpush1.msra.mxu0 0.0
        %1121 = vmatprep.mubr.f32.mxu0 0.0
        %1122 = vmatmul.mubr.f32.gmra.mrb[0].mxu0 %v1055
        %v1123 = vpop.f32.mrb[0].mxu0
        %v1124 = vadd.f32 %v1052, %v1123
        %v1125 = vpop.f32.mrb[0].mxu0
        %1126 = vdwg.mxu0
        %1127 = vst.msk [vmem:[%s268] sm:$0xff] %vm281, %v1124
        %s1128 = sand.u32 %s141, 1
        %s1129 = scalar_lea.sflag [#allocation4], %s1128
        %s1130 = sand.u32 %s141, 1
        %s1131 = smul.addr %s1130, 8
        %s1132 = scalar_lea.vmem [#allocation8], %s1131
        // Predicated region
        $region53: #{tpu_custom_call.1} parent=39 // pred_check
          %p1133 = pneg %p151
        $region54: #{tpu_custom_call.1} parent=39 // pred_check_branch
          %1135 = sbr.rel (%p1133) target = $region56
        $region55: #{tpu_custom_call.1} parent=39 // pred_region
          %s1137 = ssub.s32 128, 128
          %1138 = vsyncadd %s1129, %s1137
          %s1139 = smul.addr %s23, 128
          %s1140 = scalar_lea.hbm %s5, %s1139
          %s1142 = sshll.u32 %s1132, 4
          %s1143 = int_to_ptr.vmem [resolvable:$true] %s1142
          %1145 = dma.vmem_to_hbm [thread:$0]  %s1143, 128, %s1140, %s1129
        $region56: #{tpu_custom_call.1} parent=39 // pred_fallthru
          _
      $region40: #{tpu_custom_call.1} parent=5 // pred_fallthru
        _
      %p1146 = scmp.le.s32.totalorder 2, %s18
      // Predicated region
      $region57: #{tpu_custom_call.1} parent=5 // pred_check
        %p1147 = pneg %p1146
      $region58: #{tpu_custom_call.1} parent=5 // pred_check_branch
        %1149 = sbr.rel (%p1147) target = $region60
      $region59: #{tpu_custom_call.1} parent=5 // pred_region
        %s1150 = ssub.s32 %s18, 2
        // Predicated region
        $region61: #{tpu_custom_call.1} parent=59 // pred_check
          %p1151 = pneg %p157
        $region62: #{tpu_custom_call.1} parent=59 // pred_check_branch
          %1153 = sbr.rel (%p1151) target = $region64
        $region63: #{tpu_custom_call.1} parent=59 // pred_region
          %s1154 = sand.u32 %s142, 1
          %s1155 = scalar_lea.sflag [#allocation4], %s1154
          %s1156 = sand.u32 %s142, 1
          %s1157 = smul.addr %s1156, 8
          %s1158 = scalar_lea.vmem [#allocation8], %s1157
          %1159 = dma.done %s1155, 128
        $region64: #{tpu_custom_call.1} parent=59 // pred_fallthru
          _
      $region60: #{tpu_custom_call.1} parent=5 // pred_fallthru
        _
    $region6: #{tpu_custom_call.1} parent=1 // loop_footer
      %s22 = sadd.s32 1, %s18
    $region7: #{tpu_custom_call.1} parent=1 // loop_footer_branch
      %17 = sbr.rel target = $region3
    $region8: #{tpu_custom_call.1} parent=1 // loop_exit
      _
    %1160 = vsyncpa [#allocation3], 1
    %s1161 = scalar_lea.sflag [#allocation3], 1
    %1162 = vsyncpa %s1161, 1
    %1163 = vsyncpa [#allocation6], 1
    %1164 = vsyncpa [#allocation4], 1
    %s1165 = scalar_lea.sflag [#allocation4], 1
    %1166 = vsyncpa %s1165, 1

</llo_original>
